<compile_context>
chip_gen: v7x
topology: tpu7x:2x2x1
jax: 0.10.0
libtpu: 0.0.40
codegen_flags: <defaults>
</compile_context>

<pallas_src>
import functools

import jax
import jax.numpy as jnp
from jax.experimental import pallas as pl
from jax.experimental.pallas import tpu as pltpu

_EPS = 1e-6
_LANE = 128


def _sublane_multiple(dtype) -> int:
    # native sublane tiling: 8 for 4-byte, 16 for 2-byte, 32 for 1-byte dtypes
    return max(8, 32 // jnp.dtype(dtype).itemsize)


def _combine(s_t, s_pos, s_neg, numel):
    """Scalar finalize: combine the three global sums into the mean loss."""
    n = jnp.float32(numel)
    num_pos = s_t
    num_neg = n - num_pos
    denom = n + jnp.float32(_EPS)            # num_total + 1e-6
    pos_w = num_neg / denom
    neg_w = num_pos / denom
    return (-pos_w * s_pos - neg_w * s_neg) / n


def _bce_partial_kernel(p_ref, t_ref, out_ref, *, last_idx, rem, has_tail):
    """One grid step: stream a (tile_rows, 128) tile of preds/targets and emit
    a (3, 8, 128) vector partial (S_t, S_pos, S_neg contributions)."""
    i = pl.program_id(0)
    tr = p_ref.shape[0]

    def write_partials(p, t):
        log_p = jnp.log(p + _EPS)
        log_1mp = jnp.log(1.0 - p + _EPS)
        c_t = t
        c_pos = t * log_p
        c_neg = (1.0 - t) * log_1mp
        # Reduce only along the leading (vreg-block) axis -> pure VPU adds;
        # the cross-lane/sublane reduce to scalars is deferred to JAX.
        out_ref[0] = c_t.reshape(tr // 8, 8, _LANE).sum(axis=0)
        out_ref[1] = c_pos.reshape(tr // 8, 8, _LANE).sum(axis=0)
        out_ref[2] = c_neg.reshape(tr // 8, 8, _LANE).sum(axis=0)

    p = p_ref[...].astype(jnp.float32)
    t = t_ref[...].astype(jnp.float32)

    if has_tail:
        # Only the final tile may contain padded lanes / out-of-bounds rows.
        @pl.when(i != last_idx)
        def _():
            write_partials(p, t)

        @pl.when(i == last_idx)
        def _():
            row = jax.lax.broadcasted_iota(jnp.int32, (tr, _LANE), 0)
            col = jax.lax.broadcasted_iota(jnp.int32, (tr, _LANE), 1)
            valid = (row * _LANE + col) < rem
            # Safe fill values (applied BEFORE the logs so garbage never reaches
            # them): t=0 kills the positive term; p=eps makes log(1-p+eps)=0.
            write_partials(jnp.where(valid, p, jnp.float32(_EPS)),
                           jnp.where(valid, t, jnp.float32(0.0)))
    else:
        write_partials(p, t)


def balanced_bce_loss(preds, targets, *, tile_rows=2048):
    """Balanced BCE loss (mean). preds/targets: identical shape, any layout."""
    assert preds.shape == targets.shape
    numel = preds.size

    tile_unit = max(_sublane_multiple(preds.dtype), _sublane_multiple(targets.dtype))

    p_flat = jnp.ravel(preds)
    t_flat = jnp.ravel(targets)
    if numel % _LANE != 0:
        # Tiny pad (<128 elems) just to make the lane dim exact; values are
        # overridden by the last-tile mask, so zeros are fine.
        pad = _LANE - (numel % _LANE)
        p_flat = jnp.pad(p_flat, (0, pad))
        t_flat = jnp.pad(t_flat, (0, pad))
    rows = p_flat.size // _LANE

    if rows < tile_unit:
        # Degenerate tiny input (< ~1K elements): plain JAX is cheaper than a kernel.
        p32 = preds.astype(jnp.float32)
        t32 = targets.astype(jnp.float32)
        s_t = jnp.sum(t32)
        s_pos = jnp.sum(t32 * jnp.log(p32 + _EPS))
        s_neg = jnp.sum((1.0 - t32) * jnp.log(1.0 - p32 + _EPS))
        return _combine(s_t, s_pos, s_neg, numel)

    # Largest sublane-aligned tile not exceeding the array (keeps blocks <= array).
    max_tr = (rows // tile_unit) * tile_unit
    tr = min(int(tile_rows), max_tr)
    tr = max((tr // tile_unit) * tile_unit, tile_unit)

    grid = pl.cdiv(rows, tr)
    covered = grid * tr * _LANE
    has_tail = covered != numel                      # padded lanes or partial last block
    rem = numel - (grid - 1) * tr * _LANE            # valid elements in the last tile
    last_idx = grid - 1

    p2 = p_flat.reshape(rows, _LANE)
    t2 = t_flat.reshape(rows, _LANE)

    partials = pl.pallas_call(
        functools.partial(_bce_partial_kernel,
                          last_idx=last_idx, rem=rem, has_tail=has_tail),
        out_shape=jax.ShapeDtypeStruct((3, grid * 8, _LANE), jnp.float32),
        grid_spec=pltpu.PrefetchScalarGridSpec(
            num_scalar_prefetch=0,
            grid=(grid,),
            in_specs=[
                pl.BlockSpec((tr, _LANE), lambda i: (i, 0)),
                pl.BlockSpec((tr, _LANE), lambda i: (i, 0)),
            ],
            out_specs=pl.BlockSpec((3, 8, _LANE), lambda i: (0, i, 0)),
        ),
        compiler_params=pltpu.CompilerParams(
            # independent per-block partials -> both v7x TensorCores can help
            dimension_semantics=("parallel",),
        ),
    )(p2, t2)

    s = jnp.sum(partials, axis=(1, 2))   # (3,) -> S_t, S_pos, S_neg
    return _combine(s[0], s[1], s[2], numel)


def _reference_loss(preds, targets):
    p = preds.astype(jnp.float32)
    t = targets.astype(jnp.float32)
    num_pos = jnp.sum(t)
    num_neg = t.size - num_pos
    num_total = num_pos + num_neg
    pos_w = num_neg / (num_total + _EPS)
    neg_w = num_pos / (num_total + _EPS)
    pos_loss = -pos_w * t * jnp.log(p + _EPS)
    neg_loss = -neg_w * (1.0 - t) * jnp.log(1.0 - p + _EPS)
    return jnp.mean(pos_loss + neg_loss)


if __name__ == "__main__":
    key = jax.random.PRNGKey(0)

    def make_inputs(k, shape):
        k_p, k_t = jax.random.split(k)
        preds = jax.random.uniform(k_p, shape, jnp.float32, minval=0.01, maxval=0.99)
        targets = (jax.random.uniform(k_t, shape, jnp.float32) > 0.7).astype(jnp.float32)
        return preds, targets

    loss_fn = jax.jit(balanced_bce_loss)
    k1, k2, k3, k4 = jax.random.split(key, 4)

    # 1) lane-aligned NCHW input (single block, unmasked fast path)
    preds, targets = make_inputs(k1, (2, 4, 16, 16))
    loss = jax.block_until_ready(loss_fn(preds, targets))
    ref = jax.block_until_ready(_reference_loss(preds, targets))
    assert jnp.allclose(loss, ref, rtol=1e-5, atol=1e-6), (loss, ref)

    # 2) lane-aligned but not block-aligned (exercises masked partial last tile)
    preds, targets = make_inputs(k2, (2, 3, 24, 24))
    loss = jax.block_until_ready(loss_fn(preds, targets))
    ref = jax.block_until_ready(_reference_loss(preds, targets))
    assert jnp.allclose(loss, ref, rtol=1e-5, atol=1e-6), (loss, ref)

    # 3) tiny unaligned input (degenerate pure-JAX path)
    preds, targets = make_inputs(k3, (2, 3, 10, 10))
    loss = jax.block_until_ready(loss_fn(preds, targets))
    ref = jax.block_until_ready(_reference_loss(preds, targets))
    assert jnp.allclose(loss, ref, rtol=1e-5, atol=1e-6), (loss, ref)

    # 4) multi-block grid with a masked tail (exercises steady-state + tail mix)
    preds, targets = make_inputs(k4, (3, 4, 48, 48))
    loss = jax.block_until_ready(loss_fn(preds, targets))
    ref = jax.block_until_ready(_reference_loss(preds, targets))
    assert jnp.allclose(loss, ref, rtol=1e-5, atol=1e-6), (loss, ref)

    print("KERNEL_OK")
</pallas_src>

<mosaic_0001>
module attributes {stable_mosaic.version = 11 : i64} {
  func.func @_bce_partial_kernel(%arg0: i32, %arg1: memref<16x128xf32, #tpu.memory_space<vmem>>, %arg2: memref<16x128xf32, #tpu.memory_space<vmem>>, %arg3: memref<3x8x128xf32, #tpu.memory_space<vmem>>) attributes {dimension_semantics = [#tpu.dimension_semantics<parallel>], iteration_bounds = array<i64: 1>, scalar_prefetch = 0 : i64, scratch_operands = 0 : i64, tpu.core_type = #tpu.core_type<tc>, window_params = [{transform_indices = @transform_0, window_bounds = array<i64: 16, 128>}, {transform_indices = @transform_1, window_bounds = array<i64: 16, 128>}, {transform_indices = @transform_2, window_bounds = array<i64: 3, 8, 128>}]} {
    %c0 = arith.constant 0 : index
    %c0_0 = arith.constant 0 : index
    %0 = vector.load %arg1[%c0, %c0_0] : memref<16x128xf32, #tpu.memory_space<vmem>>, vector<16x128xf32>
    %c0_1 = arith.constant 0 : index
    %c0_2 = arith.constant 0 : index
    %1 = vector.load %arg2[%c0_1, %c0_2] : memref<16x128xf32, #tpu.memory_space<vmem>>, vector<16x128xf32>
    %cst = arith.constant 9.99999997E-7 : f32
    %2 = vector.broadcast %cst : f32 to vector<16x128xf32>
    %3 = arith.addf %0, %2 : vector<16x128xf32>
    %4 = math.log %3 : vector<16x128xf32>
    %cst_3 = arith.constant 1.000000e+00 : f32
    %5 = vector.broadcast %cst_3 : f32 to vector<16x128xf32>
    %6 = arith.subf %5, %0 : vector<16x128xf32>
    %cst_4 = arith.constant 9.99999997E-7 : f32
    %7 = vector.broadcast %cst_4 : f32 to vector<16x128xf32>
    %8 = arith.addf %6, %7 : vector<16x128xf32>
    %9 = math.log %8 : vector<16x128xf32>
    %10 = arith.mulf %1, %4 : vector<16x128xf32>
    %cst_5 = arith.constant 1.000000e+00 : f32
    %11 = vector.broadcast %cst_5 : f32 to vector<16x128xf32>
    %12 = arith.subf %11, %1 : vector<16x128xf32>
    %13 = arith.mulf %12, %9 : vector<16x128xf32>
    %14 = vector.shape_cast %1 : vector<16x128xf32> to vector<2x8x128xf32>
    %cst_6 = arith.constant dense<0.000000e+00> : vector<8x128xf32>
    %15 = vector.multi_reduction <add>, %14, %cst_6 [0] : vector<2x8x128xf32> to vector<8x128xf32>
    %c0_7 = arith.constant 0 : index
    %c0_8 = arith.constant 0 : index
    %c0_9 = arith.constant 0 : index
    %16 = vector.load %arg3[%c0_7, %c0_8, %c0_9] : memref<3x8x128xf32, #tpu.memory_space<vmem>>, vector<1x8x128xf32>
    %17 = vector.shape_cast %16 : vector<1x8x128xf32> to vector<8x128xf32>
    %18 = vector.shape_cast %15 : vector<8x128xf32> to vector<1x8x128xf32>
    tpu.vector_store %arg3[%c0_7, %c0_8, %c0_9], %18 {strides = array<i32>} : memref<3x8x128xf32, #tpu.memory_space<vmem>>, vector<1x8x128xf32>,
    %19 = vector.shape_cast %10 : vector<16x128xf32> to vector<2x8x128xf32>
    %cst_10 = arith.constant dense<0.000000e+00> : vector<8x128xf32>
    %20 = vector.multi_reduction <add>, %19, %cst_10 [0] : vector<2x8x128xf32> to vector<8x128xf32>
    %c1 = arith.constant 1 : index
    %c0_11 = arith.constant 0 : index
    %c0_12 = arith.constant 0 : index
    %21 = vector.load %arg3[%c1, %c0_11, %c0_12] : memref<3x8x128xf32, #tpu.memory_space<vmem>>, vector<1x8x128xf32>
    %22 = vector.shape_cast %21 : vector<1x8x128xf32> to vector<8x128xf32>
    %23 = vector.shape_cast %20 : vector<8x128xf32> to vector<1x8x128xf32>
    tpu.vector_store %arg3[%c1, %c0_11, %c0_12], %23 {strides = array<i32>} : memref<3x8x128xf32, #tpu.memory_space<vmem>>, vector<1x8x128xf32>,
    %24 = vector.shape_cast %13 : vector<16x128xf32> to vector<2x8x128xf32>
    %cst_13 = arith.constant dense<0.000000e+00> : vector<8x128xf32>
    %25 = vector.multi_reduction <add>, %24, %cst_13 [0] : vector<2x8x128xf32> to vector<8x128xf32>
    %c2 = arith.constant 2 : index
    %c0_14 = arith.constant 0 : index
    %c0_15 = arith.constant 0 : index
    %26 = vector.load %arg3[%c2, %c0_14, %c0_15] : memref<3x8x128xf32, #tpu.memory_space<vmem>>, vector<1x8x128xf32>
    %27 = vector.shape_cast %26 : vector<1x8x128xf32> to vector<8x128xf32>
    %28 = vector.shape_cast %25 : vector<8x128xf32> to vector<1x8x128xf32>
    tpu.vector_store %arg3[%c2, %c0_14, %c0_15], %28 {strides = array<i32>} : memref<3x8x128xf32, #tpu.memory_space<vmem>>, vector<1x8x128xf32>,
    return
  }
  func.func @transform_0(%arg0: i32) -> (i32, i32) {
    %c0_i32 = arith.constant 0 : i32
    %c0_i32_0 = arith.constant 0 : i32
    return %arg0, %c0_i32 : i32, i32
  }
  func.func @transform_1(%arg0: i32) -> (i32, i32) {
    %c0_i32 = arith.constant 0 : i32
    %c0_i32_0 = arith.constant 0 : i32
    return %arg0, %c0_i32 : i32, i32
  }
  func.func @transform_2(%arg0: i32) -> (i32, i32, i32) {
    %c0_i32 = arith.constant 0 : i32
    %c0_i32_0 = arith.constant 0 : i32
    %c0_i32_1 = arith.constant 0 : i32
    return %c0_i32, %arg0, %c0_i32_0 : i32, i32, i32
  }
}

</mosaic_0001>

<llo_original>
// kernel: balanced_bce_loss.1
$region0: #{balanced_bce_loss.1}
  #allocation0 [shape = 'u32[]', space=smem, size = 0x4, offset = 0x4, fixed_abs, tag = 'smem constant byte address 0x4 - core index']
  #allocation1 [shape = 'u32[144,128]{1,0:T(1,128)}', space=vmem, size = 0x12000, scoped, tag = 'internal scratch']
  %s0 = inlined_call_operand.vmem [shape: f32[16,128], index: 0, kind: input, shape index: {}]
  %s1 = inlined_call_operand.vmem [shape: f32[16,128], index: 1, kind: input, shape index: {}]
  %s2 = inlined_call_operand.vmem [shape: f32[3,8,128], index: 2, kind: output, shape index: {}]
  %s3 = sld [smem:[#allocation0]]
  $region18: #{balanced_bce_loss.1} parent=0
    _
  %s5 = ssub.s32 1, %s3
  %s6 = scalar_select 0, %s5, %s3
  // Predicated region
  $region2: #{balanced_bce_loss.1} parent=0 // pred_check
    _
  $region3: #{balanced_bce_loss.1} parent=0 // pred_check_branch
    %8 = sbr.rel (0) target = $region5
  $region4: #{balanced_bce_loss.1} parent=0 // pred_region
    _
  $region5: #{balanced_bce_loss.1} parent=0 // pred_fallthru
    _
  // Predicated region
  $region6: #{balanced_bce_loss.1} parent=0 // pred_check
    _
  $region7: #{balanced_bce_loss.1} parent=0 // pred_check_branch
    %10 = sbr.rel (0) target = $region9
  $region8: #{balanced_bce_loss.1} parent=0 // pred_region
    _
  $region9: #{balanced_bce_loss.1} parent=0 // pred_fallthru
    _
  %v11 = vld [vmem:[%s0] sm:$0xff]
  %v12 = vld [vmem:[%s0 + $0x8] sm:$0xff]
  %v13 = vld [vmem:[%s1] sm:$0xff]
  %v14 = vld [vmem:[%s1 + $0x8] sm:$0xff]
  %v15 = vadd.f32 %v11, 1e-06
  %v16 = vadd.f32 %v12, 1e-06
  %v17 = vlog2.pop %v15
  %v18 = vmul.f32 %v17, 0.6931472
  %v19 = vlog2.pop %v16
  %v20 = vmul.f32 %v19, 0.6931472
  %v21 = vsub.f32 1.0, %v11
  %v22 = vsub.f32 1.0, %v12
  %v23 = vadd.f32 %v21, 1e-06
  %v24 = vadd.f32 %v22, 1e-06
  %v25 = vlog2.pop %v23
  %v26 = vmul.f32 %v25, 0.6931472
  %v27 = vlog2.pop %v24
  %v28 = vmul.f32 %v27, 0.6931472
  %v29 = vmul.f32 %v13, %v18
  %v30 = vmul.f32 %v14, %v20
  %v31 = vsub.f32 1.0, %v13
  %v32 = vsub.f32 1.0, %v14
  %v33 = vmul.f32 %v31, %v26
  %v34 = vmul.f32 %v32, %v28
  %v35 = vadd.f32 %v13, %v14
  %36 = vst [vmem:[%s2] sm:$0xff] %v35
  %v37 = vadd.f32 %v29, %v30
  %s38 = scalar_lea.vmem %s2, 8
  %39 = vst [vmem:[%s38] sm:$0xff] %v37
  %v40 = vadd.f32 %v33, %v34
  %s41 = scalar_lea.vmem %s2, 16
  %42 = vst [vmem:[%s41] sm:$0xff] %v40
  // Predicated region
  $region10: #{balanced_bce_loss.1} parent=0 // pred_check
    _
  $region11: #{balanced_bce_loss.1} parent=0 // pred_check_branch
    %44 = sbr.rel (0) target = $region13
  $region12: #{balanced_bce_loss.1} parent=0 // pred_region
    _
  $region13: #{balanced_bce_loss.1} parent=0 // pred_fallthru
    _
  // Predicated region
  $region14: #{balanced_bce_loss.1} parent=0 // pred_check
    _
  $region15: #{balanced_bce_loss.1} parent=0 // pred_check_branch
    %46 = sbr.rel (0) target = $region17
  $region16: #{balanced_bce_loss.1} parent=0 // pred_region
    _
  $region17: #{balanced_bce_loss.1} parent=0 // pred_fallthru
    _

</llo_original>
